<compile_context>
chip_gen: v7x
topology: tpu7x:2x2x1
jax: 0.10.0
libtpu: 0.0.40
codegen_flags: <defaults>
</compile_context>

<pallas_src>
import functools

import jax
import jax.numpy as jnp
from jax import lax
from jax.experimental import pallas as pl
from jax.experimental.pallas import tpu as pltpu

ALPHA = 0.25
GAMMA = 1.5


def _focal_loss_kernel(x_ref, t_ref, out_ref, *, gamma, rows_total, tile_rows,
                       need_mask, binary_targets):
    x = x_ref[...].astype(jnp.float32)
    t = t_ref[...].astype(jnp.float32)

    # Stable BCE-with-logits via sigmoid(|x|):
    #   s   = sigmoid(|x|) = 0.5 + 0.5 * tanh(0.5 * |x|)   (1 EUP op, no divide)
    #   m   = max(x, 0) - x * t
    #   bce = m + log1p(exp(-|x|)) = m - log(s)
    s = 0.5 + 0.5 * jnp.tanh(0.5 * jnp.abs(x))
    m = jnp.maximum(x, 0.0) - x * t
    bce = m - jnp.log(s)

    if binary_targets:
        # pt = exp(-bce) = exp(-m) * s.  For t in {0, 1}, m is exactly 0 or |x|,
        # so pt is s or sigmoid(-|x|) = 1 - s; no second exp needed.
        one_minus_pt = jnp.where(m == 0.0, 1.0 - s, s)
    else:
        # Exact for soft / label-smoothed targets (one extra exp per element).
        pt = jnp.exp(-m) * s
        one_minus_pt = jnp.maximum(1.0 - pt, 0.0)

    if gamma == 1.5:
        # (1 - pt)**1.5 == (1 - pt) * sqrt(1 - pt): no exp/log pow lowering.
        pow_term = one_minus_pt * jnp.sqrt(one_minus_pt)
    elif gamma == 2.0:
        pow_term = one_minus_pt * one_minus_pt
    elif gamma == 1.0:
        pow_term = one_minus_pt
    else:
        pow_term = jnp.where(
            one_minus_pt > 0.0,
            jnp.exp(gamma * jnp.log(jnp.maximum(one_minus_pt, 1e-38))),
            0.0,
        )

    focal = pow_term * bce  # alpha and 1/N applied in the wrapper (scalars only)

    if need_mask:
        # Tail block: rows at/after rows_total contain stale VMEM -> select 0.
        row = (pl.program_id(0) * tile_rows
               + lax.broadcasted_iota(jnp.int32, focal.shape, 0))
        focal = jnp.where(row < rows_total, focal, 0.0)

    # Lane-dense per-block partial: reduce sublanes only; the wrapper finishes
    # the (tiny) cross-lane / cross-block sum.
    out_ref[...] = jnp.sum(focal, axis=0, keepdims=True).reshape(out_ref.shape)


def _round_down(x, m):
    return (x // m) * m


def _pick_tile_rows(R, C, x_dtype, t_dtype, max_block_bytes):
    """Row tile: a multiple of 8 (32 when large enough, to keep narrow target
    dtypes on native packed tiles) whose combined x+t block fits the budget.
    Independent of R's divisors (tail handled by cdiv grid + in-kernel mask)."""
    if R <= 8:
        return R  # one block equal to the full row extent
    per_row = C * (jnp.dtype(x_dtype).itemsize + jnp.dtype(t_dtype).itemsize)
    budget = max(8, max_block_bytes // max(per_row, 1))
    cap = _round_down(R, 8)  # largest multiple of 8 not exceeding R
    tile = max(8, min(_round_down(budget, 8), cap))
    if tile >= 32:
        tile = _round_down(tile, 32)
    return tile


def focal_loss(inputs, targets, *, alpha=ALPHA, gamma=GAMMA, binary_targets=True,
               max_block_bytes=8 << 20, vmem_limit_bytes=48 << 20):
    """Scalar focal loss (mean reduction), matching the PyTorch module.

    inputs:  float logits, any shape.
    targets: same shape, {0,1} values in any real/int dtype (int8/bf16 fine:
             cast to f32 happens in-kernel, narrowing target HBM traffic).
             For soft targets pass binary_targets=False (exact, +1 exp/elem).
    On v5e/v6e (128 MiB VMEM) callers may raise max_block_bytes to 16-24 MiB
    and vmem_limit_bytes to ~64-96 MiB; keep the defaults on v7x (64 MiB/TC).
    """
    assert inputs.shape == targets.shape
    if inputs.ndim < 2:
        x2 = inputs.reshape(1, -1)
    else:
        x2 = inputs.reshape(-1, inputs.shape[-1])  # free for contiguous arrays
    t2 = targets.reshape(x2.shape)
    R, C = x2.shape
    total = R * C

    tile_rows = _pick_tile_rows(R, C, x2.dtype, t2.dtype, max_block_bytes)
    num_blocks = pl.cdiv(R, tile_rows)
    need_mask = (R % tile_rows) != 0
    # TODO(synk): add column tiling for pathologically wide rows where even an
    # 8-row block exceeds the VMEM budget.

    kernel = functools.partial(
        _focal_loss_kernel, gamma=float(gamma), rows_total=R,
        tile_rows=tile_rows, need_mask=need_mask,
        binary_targets=bool(binary_targets))

    partials = pl.pallas_call(
        kernel,
        out_shape=jax.ShapeDtypeStruct((num_blocks, 1, C), jnp.float32),
        grid_spec=pltpu.PrefetchScalarGridSpec(
            num_scalar_prefetch=0,
            grid=(num_blocks,),
            in_specs=[
                pl.BlockSpec((tile_rows, C), lambda i: (i, 0)),
                pl.BlockSpec((tile_rows, C), lambda i: (i, 0)),
            ],
            out_specs=pl.BlockSpec((1, 1, C), lambda i: (i, 0, 0)),
        ),
        compiler_params=pltpu.CompilerParams(
            dimension_semantics=("parallel",),  # independent blocks; both TCs on v7x
            vmem_limit_bytes=vmem_limit_bytes,
        ),
    )(x2, t2)

    # Tiny final reduction; alpha and the mean divisor touch scalars only.
    return jnp.sum(partials) * jnp.float32(alpha / total)


def _focal_loss_ref(inputs, targets, alpha=ALPHA, gamma=GAMMA):
    x = inputs.astype(jnp.float32)
    t = targets.astype(jnp.float32)
    bce = jnp.maximum(x, 0.0) - x * t + jnp.log1p(jnp.exp(-jnp.abs(x)))
    pt = jnp.exp(-bce)
    return jnp.mean(alpha * (1.0 - pt) ** gamma * bce)


if __name__ == "__main__":
    key = jax.random.PRNGKey(0)
    k1, k2, k3, k4 = jax.random.split(key, 4)

    # Test 1: module-typical shape (batch, seq) of per-token logits with
    # binary {0,1} targets (fast path, single block).
    B, S = 4, 384
    logits1 = jax.random.normal(k1, (B, S), dtype=jnp.float32) * 2.0
    targets1 = (jax.random.uniform(k2, (B, S)) > 0.5).astype(jnp.float32)
    out1 = jax.block_until_ready(focal_loss(logits1, targets1))
    ref1 = _focal_loss_ref(logits1, targets1)
    assert jnp.allclose(out1, ref1, rtol=1e-4, atol=1e-6), (out1, ref1)

    # Test 2: rows not a multiple of 8 + tiny block budget -> multi-block grid
    # with a masked tail block; soft targets exercise the exact non-binary path.
    R, C = 52, 160
    logits2 = jax.random.normal(k3, (R, C), dtype=jnp.float32) * 3.0
    targets2 = jax.random.uniform(k4, (R, C), dtype=jnp.float32)
    out2 = jax.block_until_ready(
        focal_loss(logits2, targets2, binary_targets=False,
                   max_block_bytes=16 * 1024))
    ref2 = _focal_loss_ref(logits2, targets2)
    assert jnp.allclose(out2, ref2, rtol=1e-4, atol=1e-6), (out2, ref2)

    print("KERNEL_OK")
</pallas_src>

<mosaic_0001>
module attributes {stable_mosaic.version = 11 : i64} {
  func.func @_focal_loss_kernel(%arg0: i32, %arg1: memref<4x384xf32, #tpu.memory_space<vmem>>, %arg2: memref<4x384xf32, #tpu.memory_space<vmem>>, %arg3: memref<1x1x384xf32, #tpu.memory_space<vmem>>) attributes {dimension_semantics = [#tpu.dimension_semantics<parallel>], iteration_bounds = array<i64: 1>, scalar_prefetch = 0 : i64, scratch_operands = 0 : i64, tpu.core_type = #tpu.core_type<tc>, window_params = [{transform_indices = @transform_0, window_bounds = array<i64: 4, 384>}, {transform_indices = @transform_1, window_bounds = array<i64: 4, 384>}, {transform_indices = @transform_2, window_bounds = array<i64: 1, 1, 384>}]} {
    %c0 = arith.constant 0 : index
    %c0_0 = arith.constant 0 : index
    %0 = vector.load %arg1[%c0, %c0_0] : memref<4x384xf32, #tpu.memory_space<vmem>>, vector<4x384xf32>
    %c0_1 = arith.constant 0 : index
    %c0_2 = arith.constant 0 : index
    %1 = vector.load %arg2[%c0_1, %c0_2] : memref<4x384xf32, #tpu.memory_space<vmem>>, vector<4x384xf32>
    %2 = math.absf %0 : vector<4x384xf32>
    %cst = arith.constant 5.000000e-01 : f32
    %3 = vector.broadcast %cst : f32 to vector<4x384xf32>
    %4 = arith.mulf %3, %2 : vector<4x384xf32>
    %5 = math.tanh %4 : vector<4x384xf32>
    %cst_3 = arith.constant 5.000000e-01 : f32
    %6 = vector.broadcast %cst_3 : f32 to vector<4x384xf32>
    %7 = arith.mulf %6, %5 : vector<4x384xf32>
    %cst_4 = arith.constant 5.000000e-01 : f32
    %8 = vector.broadcast %cst_4 : f32 to vector<4x384xf32>
    %9 = arith.addf %8, %7 : vector<4x384xf32>
    %cst_5 = arith.constant 0.000000e+00 : f32
    %10 = vector.broadcast %cst_5 : f32 to vector<4x384xf32>
    %11 = arith.maximumf %0, %10 : vector<4x384xf32>
    %12 = arith.mulf %0, %1 : vector<4x384xf32>
    %13 = arith.subf %11, %12 : vector<4x384xf32>
    %14 = math.log %9 : vector<4x384xf32>
    %15 = arith.subf %13, %14 : vector<4x384xf32>
    %cst_6 = arith.constant 0.000000e+00 : f32
    %16 = vector.broadcast %cst_6 : f32 to vector<4x384xf32>
    %17 = arith.cmpf oeq, %13, %16 : vector<4x384xf32>
    %cst_7 = arith.constant 1.000000e+00 : f32
    %18 = vector.broadcast %cst_7 : f32 to vector<4x384xf32>
    %19 = arith.subf %18, %9 : vector<4x384xf32>
    %20 = arith.select %17, %19, %9 : vector<4x384xi1>, vector<4x384xf32>
    %21 = math.sqrt %20 : vector<4x384xf32>
    %22 = arith.mulf %20, %21 : vector<4x384xf32>
    %23 = arith.mulf %22, %15 : vector<4x384xf32>
    %cst_8 = arith.constant dense<0.000000e+00> : vector<384xf32>
    %24 = vector.multi_reduction <add>, %23, %cst_8 [0] : vector<4x384xf32> to vector<384xf32>
    %25 = vector.shape_cast %24 : vector<384xf32> to vector<1x384xf32>
    %26 = vector.shape_cast %25 : vector<1x384xf32> to vector<1x1x384xf32>
    %c0_9 = arith.constant 0 : index
    %c0_10 = arith.constant 0 : index
    %c0_11 = arith.constant 0 : index
    %27 = vector.load %arg3[%c0_9, %c0_10, %c0_11] : memref<1x1x384xf32, #tpu.memory_space<vmem>>, vector<1x1x384xf32>
    tpu.vector_store %arg3[%c0_9, %c0_10, %c0_11], %26 {strides = array<i32>} : memref<1x1x384xf32, #tpu.memory_space<vmem>>, vector<1x1x384xf32>,
    return
  }
  func.func @transform_0(%arg0: i32) -> (i32, i32) {
    %c0_i32 = arith.constant 0 : i32
    %c0_i32_0 = arith.constant 0 : i32
    return %arg0, %c0_i32 : i32, i32
  }
  func.func @transform_1(%arg0: i32) -> (i32, i32) {
    %c0_i32 = arith.constant 0 : i32
    %c0_i32_0 = arith.constant 0 : i32
    return %arg0, %c0_i32 : i32, i32
  }
  func.func @transform_2(%arg0: i32) -> (i32, i32, i32) {
    %c0_i32 = arith.constant 0 : i32
    %c0_i32_0 = arith.constant 0 : i32
    %c0_i32_1 = arith.constant 0 : i32
    return %arg0, %c0_i32, %c0_i32_0 : i32, i32, i32
  }
}

</mosaic_0001>

<llo_original>
// kernel: tpu_custom_call.1
$region0: #{tpu_custom_call.1}
  #allocation0 [shape = 'u32[]', space=smem, size = 0x4, offset = 0x4, fixed_abs, tag = 'smem constant byte address 0x4 - core index']
  #allocation1 [shape = 'u32[144,128]{1,0:T(1,128)}', space=vmem, size = 0x12000, scoped, tag = 'internal scratch']
  %s0 = inlined_call_operand.hbm [shape: f32[4,384], index: 0, kind: input, shape index: {}]
  %s1 = inlined_call_operand.hbm [shape: f32[4,384], index: 1, kind: input, shape index: {}]
  %s2 = inlined_call_operand.hbm [shape: f32[1,1,384], index: 2, kind: output, shape index: {}]
  %s3 = sld [smem:[#allocation0]]
  $region26: #{tpu_custom_call.1} parent=0
    _
  %s5 = ssub.s32 1, %s3
  %s6 = scalar_select 0, %s5, %s3
  $region1: #{tpu_custom_call.1} parent=0
    #allocation2 [shape = 'u8[6144]{0}', space=vmem, size = 0x1800, scoped, tag = 'input window, operand 0, single buffered']
    #allocation3 [shape = 's32[1]{0}', space=sflag, size = 0x4, scoped, tag = 'scoped memory for tpu_custom_call.1']
    #allocation4 [shape = 's32[1]{0}', space=sflag, size = 0x4, scoped, tag = 'scoped memory for tpu_custom_call.1']
    #allocation5 [shape = 'u8[6144]{0}', space=vmem, size = 0x1800, scoped, tag = 'input window, operand 1, single buffered']
    #allocation6 [shape = 's32[1]{0}', space=sflag, size = 0x4, scoped, tag = 'scoped memory for tpu_custom_call.1']
    #allocation7 [shape = 'u8[1536]{0}', space=vmem, size = 0x800, scoped, tag = 'output window, operand 0, single buffered']
    %7 = vsyncpa [#allocation3], 0
    %8 = vsyncpa [#allocation6], 0
    %9 = vsyncpa [#allocation4], 0
    // Predicated region
    $region2: #{tpu_custom_call.1} parent=1 // pred_check
      _
    $region3: #{tpu_custom_call.1} parent=1 // pred_check_branch
      %11 = sbr.rel (0) target = $region5
    $region4: #{tpu_custom_call.1} parent=1 // pred_region
      %s13 = ssub.s32 192, 192
      %14 = vsyncadd [#allocation3], %s13
      %s16 = sshll.u32 [#allocation2], 4
      %s17 = int_to_ptr.vmem [resolvable:$true] %s16
      %19 = dma.hbm_to_vmem [thread:$0]  %s0, 192, %s17, [#allocation3]
    $region5: #{tpu_custom_call.1} parent=1 // pred_fallthru
      _
    // Predicated region
    $region6: #{tpu_custom_call.1} parent=1 // pred_check
      _
    $region7: #{tpu_custom_call.1} parent=1 // pred_check_branch
      %21 = sbr.rel (0) target = $region9
    $region8: #{tpu_custom_call.1} parent=1 // pred_region
      %s23 = ssub.s32 192, 192
      %24 = vsyncadd [#allocation6], %s23
      %s26 = sshll.u32 [#allocation5], 4
      %s27 = int_to_ptr.vmem [resolvable:$true] %s26
      %29 = dma.hbm_to_vmem [thread:$0]  %s1, 192, %s27, [#allocation6]
    $region9: #{tpu_custom_call.1} parent=1 // pred_fallthru
      _
    // Predicated region
    $region10: #{tpu_custom_call.1} parent=1 // pred_check
      _
    $region11: #{tpu_custom_call.1} parent=1 // pred_check_branch
      %31 = sbr.rel (0) target = $region13
    $region12: #{tpu_custom_call.1} parent=1 // pred_region
      %32 = dma.done [#allocation3], 192
    $region13: #{tpu_custom_call.1} parent=1 // pred_fallthru
      _
    // Predicated region
    $region14: #{tpu_custom_call.1} parent=1 // pred_check
      _
    $region15: #{tpu_custom_call.1} parent=1 // pred_check_branch
      %34 = sbr.rel (0) target = $region17
    $region16: #{tpu_custom_call.1} parent=1 // pred_region
      %35 = dma.done [#allocation6], 192
    $region17: #{tpu_custom_call.1} parent=1 // pred_fallthru
      _
    %v36 = vld [vmem:[#allocation2] sm:$0xff]
    %v37 = vld [vmem:[#allocation2 + $0x8] sm:$0xf]
    %v38 = vld [vmem:[#allocation5] sm:$0xff]
    %v39 = vld [vmem:[#allocation5 + $0x8] sm:$0xf]
    %v40 = vand.u32 2147483647, %v36
    %v41 = vand.u32 2147483647, %v37
    %v42 = vmul.f32 %v40, 0.5
    %v43 = vmul.f32 %v41, 0.5
    %v44 = vtanh.pop %v42
    %v45 = vtanh.pop %v43
    %v46 = vmul.f32 %v44, 0.5
    %v47 = vmul.f32 %v45, 0.5
    %v48 = vadd.f32 %v46, 0.5
    %v49 = vadd.f32 %v47, 0.5
    %v50 = vmax.f32 %v36, 0.0
    %v51 = vmax.f32 %v37, 0.0
    %v52 = vmul.f32 %v36, %v38
    %v53 = vmul.f32 %v37, %v39
    %v54 = vsub.f32 %v50, %v52
    %v55 = vsub.f32 %v51, %v53
    %v56 = vlog2.pop %v48
    %v57 = vmul.f32 %v56, 0.6931472
    %v58 = vlog2.pop %v49
    %v59 = vmul.f32 %v58, 0.6931472
    %v60 = vsub.f32 %v54, %v57
    %v61 = vsub.f32 %v55, %v59
    %vm62 = vcmp.eq.f32.partialorder %v54, 0.0
    %vm63 = vcmp.eq.f32.partialorder %v55, 0.0
    %v64 = vsub.f32 1.0, %v48
    %v65 = vsub.f32 1.0, %v49
    %v66 = vsel %vm62, %v64, %v48
    %v67 = vsel %vm63, %v65, %v49
    %v68 = vrsqrt.pop %v66
    %v69 = vmul.f32 %v66, %v68
    %vm70 = vcmp.eq.f32.partialorder %v66, inf
    %v71 = vsel %vm70, %v66, %v69
    %vm72 = vcmp.eq.f32.partialorder %v66, 0.0
    %v73 = vand.u32 %v66, 2147483648
    %v74 = vsel %vm72, %v73, %v71
    %v75 = vrsqrt.pop %v67
    %v76 = vmul.f32 %v67, %v75
    %vm77 = vcmp.eq.f32.partialorder %v67, inf
    %v78 = vsel %vm77, %v67, %v76
    %vm79 = vcmp.eq.f32.partialorder %v67, 0.0
    %v80 = vand.u32 %v67, 2147483648
    %v81 = vsel %vm79, %v80, %v78
    %v82 = vmul.f32 %v66, %v74
    %v83 = vmul.f32 %v67, %v81
    %v84 = vmul.f32 %v82, %v60
    %v85 = vmul.f32 %v83, %v61
    %v87 = vcombine.high %v84, %v84
    %vm89 = vcmask 1043456
    %v90 = vsel %vm89, %v84, 0.0
    %v91 = vrot.slane %v90, 4
    %v92 = vadd.f32 %v90, %v91
    %v93 = vrot.slane %v92, 2
    %v94 = vadd.f32 %v92, %v93
    %v95 = vrot.slane %v94, 1
    %v96 = vadd.f32 %v94, %v95
    %v97 = vsel %vm89, %v87, 0.0
    %v98 = vrot.slane %v97, 4
    %v99 = vadd.f32 %v97, %v98
    %v100 = vrot.slane %v99, 2
    %v101 = vadd.f32 %v99, %v100
    %v102 = vrot.slane %v101, 1
    %v103 = vadd.f32 %v101, %v102
    %v104 = vsel %vm89, %v85, 0.0
    %v105 = vrot.slane %v104, 4
    %v106 = vadd.f32 %v104, %v105
    %v107 = vrot.slane %v106, 2
    %v108 = vadd.f32 %v106, %v107
    %v109 = vrot.slane %v108, 1
    %v110 = vadd.f32 %v108, %v109
    %v114 = vcombine.low %v96, %v103
    %v116 = vunpack.c.l.s4 1966171168
    %v117 = vunpack.c.0.s8 %v116
    %v118 = vlaneseq
    %v119 = vshrl.u32 %v118, 7
    %v120 = vsub.s32 %v117, %v119
    %v121 = vrot.slane %v114, %v120
    %v123 = vunpack.c.l.s4 1966171168
    %v124 = vunpack.c.0.s8 %v123
    %v125 = vlaneseq
    %v126 = vshrl.u32 %v125, 7
    %v127 = vsub.s32 %v124, %v126
    %v128 = vrot.slane %v110, %v127
    %v129 = vcombine.low %v121, %v128
    %v131 = vunpack.c.l.s4 1966171168
    %v132 = vunpack.c.0.s8 %v131
    %v133 = vlaneseq
    %v134 = vshrl.u32 %v133, 7
    %v135 = vsub.s32 %v132, %v134
    %v136 = vrot.slane %v129, %v135
    %v138 = vlaneseq
    %vm139 = vcmp.ge.s32.totalorder %v138, 0
    %vm140 = vcmp.lt.s32.totalorder %v138, 384
    %vm141 = vmand %vm139, %vm140
    %142 = vst.msk [vmem:[#allocation7] sm:$0x7] %vm141, %v136
    // Predicated region
    $region18: #{tpu_custom_call.1} parent=1 // pred_check
      _
    $region19: #{tpu_custom_call.1} parent=1 // pred_check_branch
      %144 = sbr.rel (0) target = $region21
    $region20: #{tpu_custom_call.1} parent=1 // pred_region
      %s146 = ssub.s32 48, 48
      %147 = vsyncadd [#allocation4], %s146
      %s149 = sshll.u32 [#allocation7], 4
      %s150 = int_to_ptr.vmem [resolvable:$true] %s149
      %152 = dma.vmem_to_hbm [thread:$0]  %s150, 48, %s2, [#allocation4]
    $region21: #{tpu_custom_call.1} parent=1 // pred_fallthru
      _
    // Predicated region
    $region22: #{tpu_custom_call.1} parent=1 // pred_check
      _
    $region23: #{tpu_custom_call.1} parent=1 // pred_check_branch
      %154 = sbr.rel (0) target = $region25
    $region24: #{tpu_custom_call.1} parent=1 // pred_region
      %155 = dma.done [#allocation4], 48
    $region25: #{tpu_custom_call.1} parent=1 // pred_fallthru
      _
    %156 = vsyncpa [#allocation3], 1
    %157 = vsyncpa [#allocation6], 1
    %158 = vsyncpa [#allocation4], 1

</llo_original>
